<compile_context>
chip_gen: v5e
topology: v5e:2x2
jax: 0.10.0
libtpu: 0.0.40
codegen_flags: <defaults>
</compile_context>

<pallas_src>
import jax
import jax.numpy as jnp
from jax.experimental import pallas as pl
from jax.experimental.pallas import tpu as pltpu

NC_PAD = 128  # lane-dense output width (n_classes zero-padded to this)


def gcnreg_kernel(a_ref, x_ref, ncnt_ref,
                  w1_ref, wh_ref, wc3_ref, b_ref, bc3_ref,
                  out_ref):
    TB, N, _ = a_ref.shape
    in_dim = x_ref.shape[-1]
    H = w1_ref.shape[-1]
    cdt = a_ref.dtype                      # compute dtype for MXU inputs (f32 or bf16)

    a = a_ref[...]                         # (TB, N, N)
    ncnt = ncnt_ref[...]                   # (TB, 1) f32, true node count per graph

    # Coalesced parameters: static slices of the packed operands.
    w1 = w1_ref[...]                       # (in_dim, H)
    w2 = wh_ref[:, 0:H]                    # (H, H)
    wc1 = wh_ref[:, H:2 * H]               # (H, H)
    wc2 = wh_ref[:, 2 * H:3 * H]           # (H, H)
    b1 = b_ref[:, 0:H]                     # (1, H) f32
    b2 = b_ref[:, H:2 * H]
    bc1 = b_ref[:, 2 * H:3 * H]
    bc2 = b_ref[:, 3 * H:4 * H]

    # ---- GraphConv 1: relu(A_norm @ (X @ W1) + b1), batched over TB graphs ----
    x2 = x_ref[...].astype(jnp.float32).reshape(TB * N, in_dim).astype(cdt)
    xw = jnp.dot(x2, w1, preferred_element_type=jnp.float32)          # (TB*N, H) f32
    xw = xw.reshape(TB, N, H).astype(cdt)
    h = jnp.einsum("bnm,bmh->bnh", a, xw,
                   preferred_element_type=jnp.float32)                # (TB, N, H) f32
    h = jnp.maximum(h + b1, 0.0)

    # ---- GraphConv 2 ----
    h2 = h.reshape(TB * N, H).astype(cdt)
    hw = jnp.dot(h2, w2, preferred_element_type=jnp.float32)
    hw = hw.reshape(TB, N, H).astype(cdt)
    h = jnp.einsum("bnm,bmh->bnh", a, hw,
                   preferred_element_type=jnp.float32)
    h = jnp.maximum(h + b2, 0.0)                                      # (TB, N, H) f32

    # ---- dgl.mean_nodes: mask padded nodes, divide by true per-graph node count ----
    ids = jax.lax.broadcasted_iota(jnp.int32, (TB, N, H), 1)
    cnt_i = ncnt.astype(jnp.int32).reshape(TB, 1, 1)
    mask = (ids < cnt_i).astype(jnp.float32)
    hg = jnp.sum(h * mask, axis=1) / ncnt                             # (TB, H) f32

    # ---- MLP head, batched over all TB pooled graphs at once ----
    z = jnp.dot(hg.astype(cdt), wc1, preferred_element_type=jnp.float32) + bc1
    z = jnp.maximum(z, 0.0)
    z = jnp.dot(z.astype(cdt), wc2, preferred_element_type=jnp.float32) + bc2
    z = jnp.maximum(z, 0.0)
    out_ref[...] = (jnp.dot(z.astype(cdt), wc3_ref[...],
                            preferred_element_type=jnp.float32) + bc3_ref[...])


def pack_params(params, nc_pad, dtype):
    """Coalesce the small parameter operands and pad the head to lane-dense width."""
    hidden = params["w1"].shape[1]
    n_classes = params["wc3"].shape[1]
    w1 = params["w1"].astype(dtype)
    wh = jnp.concatenate([params["w2"], params["wc1"], params["wc2"]],
                         axis=1).astype(dtype)                        # (H, 3H)
    wc3 = jnp.zeros((hidden, nc_pad), jnp.float32)
    wc3 = wc3.at[:, :n_classes].set(params["wc3"]).astype(dtype)      # (H, NC_PAD)
    bias = jnp.concatenate([params["b1"], params["b2"],
                            params["bc1"], params["bc2"]],
                           axis=1).astype(jnp.float32)                # (1, 4H)
    bc3 = jnp.zeros((1, nc_pad), jnp.float32)
    bc3 = bc3.at[:, :n_classes].set(params["bc3"])                    # (1, NC_PAD)
    return w1, wh, wc3, bias, bc3


def gcnreg_forward(a_norm, x, node_counts, params, *,
                   tile_b=8, compute_dtype=jnp.bfloat16):
    """a_norm: (B, N, N) normalized adjacency; x: (B, N, in_dim);
    node_counts: (B,) true node count per graph (dgl.mean_nodes denominator)."""
    B, N, in_dim = x.shape
    hidden = params["w1"].shape[1]
    n_classes = params["wc3"].shape[1]

    assert tile_b % 8 == 0, "tile_b must be a multiple of 8"
    TB = tile_b
    B_pad = pl.cdiv(B, TB) * TB
    if B_pad != B:
        pad = B_pad - B
        a_norm = jnp.pad(a_norm, ((0, pad), (0, 0), (0, 0)))
        x = jnp.pad(x, ((0, pad), (0, 0), (0, 0)))
        node_counts = jnp.concatenate(
            [node_counts, jnp.ones((pad,), node_counts.dtype)])

    a_c = a_norm.astype(compute_dtype)
    x_c = x.astype(compute_dtype)
    ncnt = node_counts.astype(jnp.float32).reshape(B_pad, 1)
    w1, wh, wc3, bias, bc3 = pack_params(params, NC_PAD, compute_dtype)

    # VMEM budget from the actual block footprint (x2 for double buffering) + params.
    isz = jnp.dtype(compute_dtype).itemsize
    block_bytes = (2 * (TB * N * N * isz + TB * N * in_dim * isz
                        + TB * 4 + TB * NC_PAD * 4)
                   + (in_dim * hidden + 3 * hidden * hidden + hidden * NC_PAD) * isz
                   + (4 * hidden + NC_PAD) * 4)
    vmem_limit = int(min(64 * 2 ** 20, max(32 * 2 ** 20, 8 * block_bytes)))

    full2d = lambda arr: pl.BlockSpec(arr.shape, lambda b: (0, 0))

    out = pl.pallas_call(
        gcnreg_kernel,
        out_shape=jax.ShapeDtypeStruct((B_pad, NC_PAD), jnp.float32),
        grid_spec=pltpu.PrefetchScalarGridSpec(
            num_scalar_prefetch=0,
            grid=(B_pad // TB,),
            in_specs=[
                pl.BlockSpec((TB, N, N), lambda b: (b, 0, 0)),       # adjacency tile
                pl.BlockSpec((TB, N, in_dim), lambda b: (b, 0, 0)),  # feature tile
                pl.BlockSpec((TB, 1), lambda b: (b, 0)),             # node counts
                full2d(w1), full2d(wh), full2d(wc3),                 # weights (resident)
                full2d(bias), full2d(bc3),                           # biases (resident)
            ],
            out_specs=pl.BlockSpec((TB, NC_PAD), lambda b: (b, 0)),  # lane-dense block
        ),
        compiler_params=pltpu.CompilerParams(
            dimension_semantics=("parallel",),       # shards across TCs on v7x
            vmem_limit_bytes=vmem_limit),
    )(a_c, x_c, ncnt, w1, wh, wc3, bias, bc3)

    return out[:B, :n_classes]


def make_params(key, in_dim, hidden, n_classes):
    ks = jax.random.split(key, 10)
    glorot = lambda k, fi, fo: (jax.random.normal(k, (fi, fo), jnp.float32)
                                * jnp.sqrt(2.0 / (fi + fo)))
    small = lambda k, n: 0.01 * jax.random.normal(k, (1, n), jnp.float32)
    return {
        "w1": glorot(ks[0], in_dim, hidden),    "b1": small(ks[1], hidden),
        "w2": glorot(ks[2], hidden, hidden),    "b2": small(ks[3], hidden),
        "wc1": glorot(ks[4], hidden, hidden),   "bc1": small(ks[5], hidden),
        "wc2": glorot(ks[6], hidden, hidden),   "bc2": small(ks[7], hidden),
        "wc3": glorot(ks[8], hidden, n_classes), "bc3": small(ks[9], n_classes),
    }


def normalize_adjacency(adj):
    """Symmetric GCN normalization D^-1/2 A D^-1/2 (DGL GraphConv norm='both')."""
    deg = jnp.sum(adj, axis=-1)
    dinv = jnp.where(deg > 0, 1.0 / jnp.sqrt(deg), 0.0)
    return adj * dinv[:, :, None] * dinv[:, None, :]


def reference_forward(a_norm, x, node_counts, p):
    """Pure-JAX f32 reference with true-node-count mean pooling."""
    B, N, _ = x.shape
    h = jnp.maximum(jnp.einsum("bnm,bmf->bnf", a_norm, x @ p["w1"]) + p["b1"], 0.0)
    h = jnp.maximum(jnp.einsum("bnm,bmf->bnf", a_norm, h @ p["w2"]) + p["b2"], 0.0)
    cnt = node_counts.astype(jnp.float32)
    mask = (jnp.arange(N)[None, :] < cnt[:, None]).astype(jnp.float32)
    hg = jnp.sum(h * mask[:, :, None], axis=1) / cnt[:, None]
    z = jnp.maximum(hg @ p["wc1"] + p["bc1"], 0.0)
    z = jnp.maximum(z @ p["wc2"] + p["bc2"], 0.0)
    return z @ p["wc3"] + p["bc3"]


if __name__ == "__main__":
    B, N, in_dim, hidden, n_classes = 16, 8, 16, 32, 1
    TB = 8

    key = jax.random.PRNGKey(0)
    k_feat, k_adj, k_cnt, k_param = jax.random.split(key, 4)

    # Per-graph true node counts (graphs zero-padded to N nodes).
    node_counts = jax.random.randint(k_cnt, (B,), 5, N + 1)
    valid = (jnp.arange(N)[None, :] < node_counts[:, None]).astype(jnp.float32)

    # Node features (B, N, in_dim) — padded-node rows are masked out by pooling.
    x = jax.random.normal(k_feat, (B, N, in_dim), jnp.float32)

    # Random symmetric adjacency + self loops on valid nodes, GCN-normalized.
    raw = (jax.random.uniform(k_adj, (B, N, N)) > 0.5).astype(jnp.float32)
    adj = jnp.maximum(raw, jnp.swapaxes(raw, -1, -2))
    adj = jnp.maximum(adj, jnp.eye(N, dtype=jnp.float32)[None])
    adj = adj * valid[:, :, None] * valid[:, None, :]
    a_norm = normalize_adjacency(adj)

    params = make_params(k_param, in_dim, hidden, n_classes)

    # f32 MXU-input path (tighter check) and bf16 MXU-input path (v6e/v7x fast path).
    out_f32 = jax.block_until_ready(
        gcnreg_forward(a_norm, x, node_counts, params,
                       tile_b=TB, compute_dtype=jnp.float32))
    out_bf16 = jax.block_until_ready(
        gcnreg_forward(a_norm, x, node_counts, params,
                       tile_b=TB, compute_dtype=jnp.bfloat16))

    ref = reference_forward(a_norm, x, node_counts, params)

    assert out_f32.shape == (B, n_classes)
    assert out_bf16.shape == (B, n_classes)
    assert jnp.allclose(out_f32, ref, atol=2e-2, rtol=2e-2), (out_f32, ref)
    assert jnp.allclose(out_bf16, ref, atol=1e-1, rtol=1e-1), (out_bf16, ref)

    # TODO(synk): saliency=True (grad of output w.r.t. node features) is a
    # backward-pass concern and is not represented in this forward-only kernel.
    print("KERNEL_OK")
</pallas_src>

<mosaic_0001>
module attributes {stable_mosaic.version = 11 : i64} {
  func.func @gcnreg_kernel(%arg0: i32, %arg1: memref<8x8x8xf32, #tpu.memory_space<vmem>>, %arg2: memref<8x8x16xf32, #tpu.memory_space<vmem>>, %arg3: memref<8x1xf32, #tpu.memory_space<vmem>>, %arg4: memref<16x32xf32, #tpu.memory_space<vmem>>, %arg5: memref<32x96xf32, #tpu.memory_space<vmem>>, %arg6: memref<32x128xf32, #tpu.memory_space<vmem>>, %arg7: memref<1x128xf32, #tpu.memory_space<vmem>>, %arg8: memref<1x128xf32, #tpu.memory_space<vmem>>, %arg9: memref<8x128xf32, #tpu.memory_space<vmem>>) attributes {dimension_semantics = [#tpu.dimension_semantics<parallel>], iteration_bounds = array<i64: 2>, scalar_prefetch = 0 : i64, scratch_operands = 0 : i64, tpu.core_type = #tpu.core_type<tc>, window_params = [{transform_indices = @transform_0, window_bounds = array<i64: 8, 8, 8>}, {transform_indices = @transform_1, window_bounds = array<i64: 8, 8, 16>}, {transform_indices = @transform_2, window_bounds = array<i64: 8, 1>}, {pipeline_mode = #tpu.pipeline_mode<synchronous>, transform_indices = @transform_3, window_bounds = array<i64: 16, 32>}, {pipeline_mode = #tpu.pipeline_mode<synchronous>, transform_indices = @transform_4, window_bounds = array<i64: 32, 96>}, {pipeline_mode = #tpu.pipeline_mode<synchronous>, transform_indices = @transform_5, window_bounds = array<i64: 32, 128>}, {pipeline_mode = #tpu.pipeline_mode<synchronous>, transform_indices = @transform_6, window_bounds = array<i64: 1, 128>}, {pipeline_mode = #tpu.pipeline_mode<synchronous>, transform_indices = @transform_7, window_bounds = array<i64: 1, 128>}, {transform_indices = @transform_8, window_bounds = array<i64: 8, 128>}]} {
    %c0 = arith.constant 0 : index
    %c0_0 = arith.constant 0 : index
    %c0_1 = arith.constant 0 : index
    %0 = vector.load %arg1[%c0, %c0_0, %c0_1] : memref<8x8x8xf32, #tpu.memory_space<vmem>>, vector<8x8x8xf32>
    %c0_2 = arith.constant 0 : index
    %c0_3 = arith.constant 0 : index
    %1 = vector.load %arg3[%c0_2, %c0_3] : memref<8x1xf32, #tpu.memory_space<vmem>>, vector<8x1xf32>
    %c0_4 = arith.constant 0 : index
    %c0_5 = arith.constant 0 : index
    %2 = vector.load %arg4[%c0_4, %c0_5] : memref<16x32xf32, #tpu.memory_space<vmem>>, vector<16x32xf32>
    %c0_6 = arith.constant 0 : index
    %c0_7 = arith.constant 0 : index
    %3 = vector.load %arg5[%c0_6, %c0_7] : memref<32x96xf32, #tpu.memory_space<vmem>>, vector<32x32xf32>
    %c0_8 = arith.constant 0 : index
    %c32 = arith.constant 32 : index
    %4 = vector.load %arg5[%c0_8, %c32] : memref<32x96xf32, #tpu.memory_space<vmem>>, vector<32x32xf32>
    %c0_9 = arith.constant 0 : index
    %c64 = arith.constant 64 : index
    %5 = vector.load %arg5[%c0_9, %c64] : memref<32x96xf32, #tpu.memory_space<vmem>>, vector<32x32xf32>
    %c0_10 = arith.constant 0 : index
    %c0_11 = arith.constant 0 : index
    %6 = vector.load %arg7[%c0_10, %c0_11] : memref<1x128xf32, #tpu.memory_space<vmem>>, vector<1x32xf32>
    %c0_12 = arith.constant 0 : index
    %c32_13 = arith.constant 32 : index
    %7 = vector.load %arg7[%c0_12, %c32_13] : memref<1x128xf32, #tpu.memory_space<vmem>>, vector<1x32xf32>
    %c0_14 = arith.constant 0 : index
    %c64_15 = arith.constant 64 : index
    %8 = vector.load %arg7[%c0_14, %c64_15] : memref<1x128xf32, #tpu.memory_space<vmem>>, vector<1x32xf32>
    %c0_16 = arith.constant 0 : index
    %c96 = arith.constant 96 : index
    %9 = vector.load %arg7[%c0_16, %c96] : memref<1x128xf32, #tpu.memory_space<vmem>>, vector<1x32xf32>
    %c0_17 = arith.constant 0 : index
    %c0_18 = arith.constant 0 : index
    %c0_19 = arith.constant 0 : index
    %10 = vector.load %arg2[%c0_17, %c0_18, %c0_19] : memref<8x8x16xf32, #tpu.memory_space<vmem>>, vector<8x8x16xf32>
    %11 = vector.shape_cast %10 : vector<8x8x16xf32> to vector<64x16xf32>
    %cst = arith.constant dense<0.000000e+00> : vector<64x32xf32>
    %12 = tpu.matmul %11, %2, %cst {dimension_numbers = #tpu.dot_dimension_numbers<[1], [0], [0], [1], [0, 0, 1, 1], [], []>} : vector<64x16xf32>, vector<16x32xf32>, vector<64x32xf32> -> vector<64x32xf32>
    %13 = vector.shape_cast %12 : vector<64x32xf32> to vector<8x8x32xf32>
    "tpu.trace_start"() <{level = 10 : i32, message = "bnm,bmh->bnh"}> : () -> ()
    %cst_20 = arith.constant dense<0.000000e+00> : vector<8x8x32xf32>
    %14 = tpu.matmul %0, %13, %cst_20 {dimension_numbers = #tpu.dot_dimension_numbers<[2], [1], [1], [2], [0, 0, 0, 1, 1, 2], [0], [0]>} : vector<8x8x8xf32>, vector<8x8x32xf32>, vector<8x8x32xf32> -> vector<8x8x32xf32>
    "tpu.trace_stop"() : () -> ()
    %15 = vector.shape_cast %6 : vector<1x32xf32> to vector<1x1x32xf32>
    %16 = vector.broadcast %15 : vector<1x1x32xf32> to vector<8x8x32xf32>
    %17 = arith.addf %14, %16 : vector<8x8x32xf32>
    %cst_21 = arith.constant 0.000000e+00 : f32
    %18 = vector.broadcast %cst_21 : f32 to vector<8x8x32xf32>
    %19 = arith.maximumf %17, %18 : vector<8x8x32xf32>
    %20 = vector.shape_cast %19 : vector<8x8x32xf32> to vector<64x32xf32>
    %cst_22 = arith.constant dense<0.000000e+00> : vector<64x32xf32>
    %21 = tpu.matmul %20, %3, %cst_22 {dimension_numbers = #tpu.dot_dimension_numbers<[1], [0], [0], [1], [0, 0, 1, 1], [], []>} : vector<64x32xf32>, vector<32x32xf32>, vector<64x32xf32> -> vector<64x32xf32>
    %22 = vector.shape_cast %21 : vector<64x32xf32> to vector<8x8x32xf32>
    "tpu.trace_start"() <{level = 10 : i32, message = "bnm,bmh->bnh"}> : () -> ()
    %cst_23 = arith.constant dense<0.000000e+00> : vector<8x8x32xf32>
    %23 = tpu.matmul %0, %22, %cst_23 {dimension_numbers = #tpu.dot_dimension_numbers<[2], [1], [1], [2], [0, 0, 0, 1, 1, 2], [0], [0]>} : vector<8x8x8xf32>, vector<8x8x32xf32>, vector<8x8x32xf32> -> vector<8x8x32xf32>
    "tpu.trace_stop"() : () -> ()
    %24 = vector.shape_cast %7 : vector<1x32xf32> to vector<1x1x32xf32>
    %25 = vector.broadcast %24 : vector<1x1x32xf32> to vector<8x8x32xf32>
    %26 = arith.addf %23, %25 : vector<8x8x32xf32>
    %cst_24 = arith.constant 0.000000e+00 : f32
    %27 = vector.broadcast %cst_24 : f32 to vector<8x8x32xf32>
    %28 = arith.maximumf %26, %27 : vector<8x8x32xf32>
    %29 = tpu.iota {dimensions = array<i32: 1>} : vector<8x8x32xi32>
    %30 = arith.fptosi %1 : vector<8x1xf32> to vector<8x1xi32>
    %31 = vector.shape_cast %30 : vector<8x1xi32> to vector<8x1x1xi32>
    %32 = vector.broadcast %31 : vector<8x1x1xi32> to vector<8x8x32xi32>
    %33 = arith.cmpi slt, %29, %32 : vector<8x8x32xi32>
    %34 = arith.extui %33 : vector<8x8x32xi1> to vector<8x8x32xi32>
    %35 = arith.sitofp %34 : vector<8x8x32xi32> to vector<8x8x32xf32>
    %36 = arith.mulf %28, %35 : vector<8x8x32xf32>
    %cst_25 = arith.constant dense<0.000000e+00> : vector<8x32xf32>
    %37 = vector.multi_reduction <add>, %36, %cst_25 [1] : vector<8x8x32xf32> to vector<8x32xf32>
    %38 = vector.broadcast %1 : vector<8x1xf32> to vector<8x32xf32>
    %39 = arith.divf %37, %38 : vector<8x32xf32>
    %cst_26 = arith.constant dense<0.000000e+00> : vector<8x32xf32>
    %40 = tpu.matmul %39, %4, %cst_26 {dimension_numbers = #tpu.dot_dimension_numbers<[1], [0], [0], [1], [0, 0, 1, 1], [], []>} : vector<8x32xf32>, vector<32x32xf32>, vector<8x32xf32> -> vector<8x32xf32>
    %41 = vector.broadcast %8 : vector<1x32xf32> to vector<8x32xf32>
    %42 = arith.addf %40, %41 : vector<8x32xf32>
    %cst_27 = arith.constant 0.000000e+00 : f32
    %43 = vector.broadcast %cst_27 : f32 to vector<8x32xf32>
    %44 = arith.maximumf %42, %43 : vector<8x32xf32>
    %cst_28 = arith.constant dense<0.000000e+00> : vector<8x32xf32>
    %45 = tpu.matmul %44, %5, %cst_28 {dimension_numbers = #tpu.dot_dimension_numbers<[1], [0], [0], [1], [0, 0, 1, 1], [], []>} : vector<8x32xf32>, vector<32x32xf32>, vector<8x32xf32> -> vector<8x32xf32>
    %46 = vector.broadcast %9 : vector<1x32xf32> to vector<8x32xf32>
    %47 = arith.addf %45, %46 : vector<8x32xf32>
    %cst_29 = arith.constant 0.000000e+00 : f32
    %48 = vector.broadcast %cst_29 : f32 to vector<8x32xf32>
    %49 = arith.maximumf %47, %48 : vector<8x32xf32>
    %c0_30 = arith.constant 0 : index
    %c0_31 = arith.constant 0 : index
    %50 = vector.load %arg6[%c0_30, %c0_31] : memref<32x128xf32, #tpu.memory_space<vmem>>, vector<32x128xf32>
    %cst_32 = arith.constant dense<0.000000e+00> : vector<8x128xf32>
    %51 = tpu.matmul %49, %50, %cst_32 {dimension_numbers = #tpu.dot_dimension_numbers<[1], [0], [0], [1], [0, 0, 1, 1], [], []>} : vector<8x32xf32>, vector<32x128xf32>, vector<8x128xf32> -> vector<8x128xf32>
    %c0_33 = arith.constant 0 : index
    %c0_34 = arith.constant 0 : index
    %52 = vector.load %arg8[%c0_33, %c0_34] : memref<1x128xf32, #tpu.memory_space<vmem>>, vector<1x128xf32>
    %53 = vector.broadcast %52 : vector<1x128xf32> to vector<8x128xf32>
    %54 = arith.addf %51, %53 : vector<8x128xf32>
    %c0_35 = arith.constant 0 : index
    %c0_36 = arith.constant 0 : index
    %55 = vector.load %arg9[%c0_35, %c0_36] : memref<8x128xf32, #tpu.memory_space<vmem>>, vector<8x128xf32>
    tpu.vector_store %arg9[%c0_35, %c0_36], %54 {strides = array<i32>} : memref<8x128xf32, #tpu.memory_space<vmem>>, vector<8x128xf32>,
    return
  }
  func.func @transform_0(%arg0: i32) -> (i32, i32, i32) {
    %c0_i32 = arith.constant 0 : i32
    %c0_i32_0 = arith.constant 0 : i32
    %c0_i32_1 = arith.constant 0 : i32
    return %arg0, %c0_i32, %c0_i32_0 : i32, i32, i32
  }
  func.func @transform_1(%arg0: i32) -> (i32, i32, i32) {
    %c0_i32 = arith.constant 0 : i32
    %c0_i32_0 = arith.constant 0 : i32
    %c0_i32_1 = arith.constant 0 : i32
    return %arg0, %c0_i32, %c0_i32_0 : i32, i32, i32
  }
  func.func @transform_2(%arg0: i32) -> (i32, i32) {
    %c0_i32 = arith.constant 0 : i32
    %c0_i32_0 = arith.constant 0 : i32
    return %arg0, %c0_i32 : i32, i32
  }
  func.func @transform_3(%arg0: i32) -> (i32, i32) {
    %c0_i32 = arith.constant 0 : i32
    %c0_i32_0 = arith.constant 0 : i32
    %c0_i32_1 = arith.constant 0 : i32
    return %c0_i32, %c0_i32_0 : i32, i32
  }
  func.func @transform_4(%arg0: i32) -> (i32, i32) {
    %c0_i32 = arith.constant 0 : i32
    %c0_i32_0 = arith.constant 0 : i32
    %c0_i32_1 = arith.constant 0 : i32
    return %c0_i32, %c0_i32_0 : i32, i32
  }
  func.func @transform_5(%arg0: i32) -> (i32, i32) {
    %c0_i32 = arith.constant 0 : i32
    %c0_i32_0 = arith.constant 0 : i32
    %c0_i32_1 = arith.constant 0 : i32
    return %c0_i32, %c0_i32_0 : i32, i32
  }
  func.func @transform_6(%arg0: i32) -> (i32, i32) {
    %c0_i32 = arith.constant 0 : i32
    %c0_i32_0 = arith.constant 0 : i32
    %c0_i32_1 = arith.constant 0 : i32
    return %c0_i32, %c0_i32_0 : i32, i32
  }
  func.func @transform_7(%arg0: i32) -> (i32, i32) {
    %c0_i32 = arith.constant 0 : i32
    %c0_i32_0 = arith.constant 0 : i32
    %c0_i32_1 = arith.constant 0 : i32
    return %c0_i32, %c0_i32_0 : i32, i32
  }
  func.func @transform_8(%arg0: i32) -> (i32, i32) {
    %c0_i32 = arith.constant 0 : i32
    %c0_i32_0 = arith.constant 0 : i32
    return %arg0, %c0_i32 : i32, i32
  }
}

</mosaic_0001>

<llo_original>
// kernel: tpu_custom_call.1
$region0: #{tpu_custom_call.1}
  #allocation0 [shape = 'u32[]', space=smem, size = 0x4, offset = 0x4, fixed_abs, tag = 'smem constant byte address 0x4 - core index']
  #allocation1 [shape = 'u32[72,128]{1,0:T(1,128)}', space=vmem, size = 0x9000, scoped, tag = 'internal scratch']
  %s0 = inlined_call_operand.vmem [shape: f32[16,8,8], index: 0, kind: input, shape index: {}]
  %s1 = inlined_call_operand.vmem [shape: f32[16,8,16], index: 1, kind: input, shape index: {}]
  %s2 = inlined_call_operand.vmem [shape: f32[16,1], index: 2, kind: input, shape index: {}]
  %s3 = inlined_call_operand.vmem [shape: f32[16,32], index: 3, kind: input, shape index: {}]
  %s4 = inlined_call_operand.vmem [shape: f32[32,96], index: 4, kind: input, shape index: {}]
  %s5 = inlined_call_operand.vmem [shape: f32[32,128], index: 5, kind: input, shape index: {}]
  %s6 = inlined_call_operand.vmem [shape: f32[1,128], index: 6, kind: input, shape index: {}]
  %s7 = inlined_call_operand.vmem [shape: f32[1,128], index: 7, kind: input, shape index: {}]
  %s8 = inlined_call_operand.hbm [shape: f32[16,128], index: 8, kind: output, shape index: {}]
  %s9 = sld [smem:[#allocation0]]
  $region65: #{tpu_custom_call.1} parent=0
    _
  %s11 = ssub.s32 1, %s9
  %s12 = scalar_select 0, %s11, %s9
  $region1: #{tpu_custom_call.1} parent=0
    #allocation2 [shape = 'u8[8192]{0}', space=vmem, size = 0x2000, scoped, tag = 'output window, operand 0']
    #allocation3 [shape = 's32[2]{0}', space=sflag, size = 0x8, scoped, tag = 'scoped memory for tpu_custom_call.1']
    %13 = vsyncpa [#allocation3], 0
    %s14 = scalar_lea.sflag [#allocation3], 1
    %15 = vsyncpa %s14, 0
    loop: start=0, step=1, limit=4
    $region2: #{tpu_custom_call.1} parent=1 // loop_pre_header
      _
    $region3: #{tpu_custom_call.1} parent=1 // loop_header
      %s17 = sphi 0, %s21
      %p18 = scmp.ge.s32.totalorder %s17, 4
      %s27 = sphi 0, %s29
      %s30 = sphi 0, %s27
      %s31 = sphi 0, %s30
      %s47 = sphi 0, %s31
      %s53 = sphi 0, %s55
      %s56 = sphi 0, %s53
      %s57 = sphi 0, %s56
      %s73 = sphi 0, %s57
      %s79 = sphi 0, %s81
      %s82 = sphi 0, %s79
      %s83 = sphi 0, %s82
      %s99 = sphi 0, %s83
      %s103 = sphi 0, %s103
      %s105 = sphi 0, %s103
      %s106 = sphi 0, %s105
      %s120 = sphi 0, %s106
      %s124 = sphi 0, %s124
      %s126 = sphi 0, %s124
      %s127 = sphi 0, %s126
      %s141 = sphi 0, %s127
      %s145 = sphi 0, %s145
      %s147 = sphi 0, %s145
      %s148 = sphi 0, %s147
      %s162 = sphi 0, %s148
      %s166 = sphi 0, %s166
      %s168 = sphi 0, %s166
      %s169 = sphi 0, %s168
      %s183 = sphi 0, %s169
      %s187 = sphi 0, %s187
      %s189 = sphi 0, %s187
      %s190 = sphi 0, %s189
      %s204 = sphi 0, %s190
      %s210 = sphi 0, %s212
      %s213 = sphi 0, %s210
      %s214 = sphi 0, %s213
      %s230 = sphi 0, %s214
    $region4: #{tpu_custom_call.1} parent=1 // loop_header_branch
      %20 = sbr.rel (%p18) target = $region8
    $region5: #{tpu_custom_call.1} parent=1 // loop_body
      %s22 = ssub.s32 %s17, 1
      %s23 = ssub.s32 %s17, 2
      %s24 = sadd.s32 %s17, 1
      %s25 = ssub.s32 %s17, %s24
      %p26 = scmp.eq.s32.totalorder %s25, 0
      %s28 = sadd.s32 %s27, 1
      %s29 = scalar_select %p26, %s27, %s28
      %p32 = pneg %p26
      %p33 = scmp.eq.s32.totalorder %s17, 1
      %p34 = por %p32, %p33
      %p35 = scmp.ne.s32.totalorder %s27, %s30
      %p36 = scmp.eq.s32.totalorder %s17, 0
      %p37 = por %p35, %p36
      %p38 = scmp.ne.s32.totalorder %s27, %s30
      %p39 = scmp.eq.s32.totalorder %s22, 1
      %p40 = por %p38, %p39
      %p41 = scmp.ne.s32.totalorder %s30, %s31
      %p42 = scmp.eq.s32.totalorder %s22, 0
      %p43 = por %p41, %p42
      %p44 = scmp.ne.s32.totalorder %s30, %s31
      %p45 = scmp.eq.s32.totalorder %s23, 1
      %p46 = por %p44, %p45
      %p48 = scmp.ne.s32.totalorder %s31, %s47
      %p49 = scmp.eq.s32.totalorder %s23, 0
      %p50 = por %p48, %p49
      %s51 = ssub.s32 %s17, %s24
      %p52 = scmp.eq.s32.totalorder %s51, 0
      %s54 = sadd.s32 %s53, 1
      %s55 = scalar_select %p52, %s53, %s54
      %p58 = pneg %p52
      %p59 = scmp.eq.s32.totalorder %s17, 1
      %p60 = por %p58, %p59
      %p61 = scmp.ne.s32.totalorder %s53, %s56
      %p62 = scmp.eq.s32.totalorder %s17, 0
      %p63 = por %p61, %p62
      %p64 = scmp.ne.s32.totalorder %s53, %s56
      %p65 = scmp.eq.s32.totalorder %s22, 1
      %p66 = por %p64, %p65
      %p67 = scmp.ne.s32.totalorder %s56, %s57
      %p68 = scmp.eq.s32.totalorder %s22, 0
      %p69 = por %p67, %p68
      %p70 = scmp.ne.s32.totalorder %s56, %s57
      %p71 = scmp.eq.s32.totalorder %s23, 1
      %p72 = por %p70, %p71
      %p74 = scmp.ne.s32.totalorder %s57, %s73
      %p75 = scmp.eq.s32.totalorder %s23, 0
      %p76 = por %p74, %p75
      %s77 = ssub.s32 %s17, %s24
      %p78 = scmp.eq.s32.totalorder %s77, 0
      %s80 = sadd.s32 %s79, 1
      %s81 = scalar_select %p78, %s79, %s80
      %p84 = pneg %p78
      %p85 = scmp.eq.s32.totalorder %s17, 1
      %p86 = por %p84, %p85
      %p87 = scmp.ne.s32.totalorder %s79, %s82
      %p88 = scmp.eq.s32.totalorder %s17, 0
      %p89 = por %p87, %p88
      %p90 = scmp.ne.s32.totalorder %s79, %s82
      %p91 = scmp.eq.s32.totalorder %s22, 1
      %p92 = por %p90, %p91
      %p93 = scmp.ne.s32.totalorder %s82, %s83
      %p94 = scmp.eq.s32.totalorder %s22, 0
      %p95 = por %p93, %p94
      %p96 = scmp.ne.s32.totalorder %s82, %s83
      %p97 = scmp.eq.s32.totalorder %s23, 1
      %p98 = por %p96, %p97
      %p100 = scmp.ne.s32.totalorder %s83, %s99
      %p101 = scmp.eq.s32.totalorder %s23, 0
      %p102 = por %p100, %p101
      %s104 = sadd.s32 %s103, 1
      %p107 = scmp.eq.s32.totalorder %s17, 1
      %p108 = scmp.ne.s32.totalorder %s103, %s105
      %p109 = scmp.eq.s32.totalorder %s17, 0
      %p110 = por %p108, %p109
      %p111 = scmp.ne.s32.totalorder %s103, %s105
      %p112 = scmp.eq.s32.totalorder %s22, 1
      %p113 = por %p111, %p112
      %p114 = scmp.ne.s32.totalorder %s105, %s106
      %p115 = scmp.eq.s32.totalorder %s22, 0
      %p116 = por %p114, %p115
      %p117 = scmp.ne.s32.totalorder %s105, %s106
      %p118 = scmp.eq.s32.totalorder %s23, 1
      %p119 = por %p117, %p118
      %p121 = scmp.ne.s32.totalorder %s106, %s120
      %p122 = scmp.eq.s32.totalorder %s23, 0
      %p123 = por %p121, %p122
      %s125 = sadd.s32 %s124, 1
      %p128 = scmp.eq.s32.totalorder %s17, 1
      %p129 = scmp.ne.s32.totalorder %s124, %s126
      %p130 = scmp.eq.s32.totalorder %s17, 0
      %p131 = por %p129, %p130
      %p132 = scmp.ne.s32.totalorder %s124, %s126
      %p133 = scmp.eq.s32.totalorder %s22, 1
      %p134 = por %p132, %p133
      %p135 = scmp.ne.s32.totalorder %s126, %s127
      %p136 = scmp.eq.s32.totalorder %s22, 0
      %p137 = por %p135, %p136
      %p138 = scmp.ne.s32.totalorder %s126, %s127
      %p139 = scmp.eq.s32.totalorder %s23, 1
      %p140 = por %p138, %p139
      %p142 = scmp.ne.s32.totalorder %s127, %s141
      %p143 = scmp.eq.s32.totalorder %s23, 0
      %p144 = por %p142, %p143
      %s146 = sadd.s32 %s145, 1
      %p149 = scmp.eq.s32.totalorder %s17, 1
      %p150 = scmp.ne.s32.totalorder %s145, %s147
      %p151 = scmp.eq.s32.totalorder %s17, 0
      %p152 = por %p150, %p151
      %p153 = scmp.ne.s32.totalorder %s145, %s147
      %p154 = scmp.eq.s32.totalorder %s22, 1
      %p155 = por %p153, %p154
      %p156 = scmp.ne.s32.totalorder %s147, %s148
      %p157 = scmp.eq.s32.totalorder %s22, 0
      %p158 = por %p156, %p157
      %p159 = scmp.ne.s32.totalorder %s147, %s148
      %p160 = scmp.eq.s32.totalorder %s23, 1
      %p161 = por %p159, %p160
      %p163 = scmp.ne.s32.totalorder %s148, %s162
      %p164 = scmp.eq.s32.totalorder %s23, 0
      %p165 = por %p163, %p164
      %s167 = sadd.s32 %s166, 1
      %p170 = scmp.eq.s32.totalorder %s17, 1
      %p171 = scmp.ne.s32.totalorder %s166, %s168
      %p172 = scmp.eq.s32.totalorder %s17, 0
      %p173 = por %p171, %p172
      %p174 = scmp.ne.s32.totalorder %s166, %s168
      %p175 = scmp.eq.s32.totalorder %s22, 1
      %p176 = por %p174, %p175
      %p177 = scmp.ne.s32.totalorder %s168, %s169
      %p178 = scmp.eq.s32.totalorder %s22, 0
      %p179 = por %p177, %p178
      %p180 = scmp.ne.s32.totalorder %s168, %s169
      %p181 = scmp.eq.s32.totalorder %s23, 1
      %p182 = por %p180, %p181
      %p184 = scmp.ne.s32.totalorder %s169, %s183
      %p185 = scmp.eq.s32.totalorder %s23, 0
      %p186 = por %p184, %p185
      %s188 = sadd.s32 %s187, 1
      %p191 = scmp.eq.s32.totalorder %s17, 1
      %p192 = scmp.ne.s32.totalorder %s187, %s189
      %p193 = scmp.eq.s32.totalorder %s17, 0
      %p194 = por %p192, %p193
      %p195 = scmp.ne.s32.totalorder %s187, %s189
      %p196 = scmp.eq.s32.totalorder %s22, 1
      %p197 = por %p195, %p196
      %p198 = scmp.ne.s32.totalorder %s189, %s190
      %p199 = scmp.eq.s32.totalorder %s22, 0
      %p200 = por %p198, %p199
      %p201 = scmp.ne.s32.totalorder %s189, %s190
      %p202 = scmp.eq.s32.totalorder %s23, 1
      %p203 = por %p201, %p202
      %p205 = scmp.ne.s32.totalorder %s190, %s204
      %p206 = scmp.eq.s32.totalorder %s23, 0
      %p207 = por %p205, %p206
      %s208 = ssub.s32 %s17, %s24
      %p209 = scmp.eq.s32.totalorder %s208, 0
      %s211 = sadd.s32 %s210, 1
      %s212 = scalar_select %p209, %s210, %s211
      %p215 = pneg %p209
      %p216 = scmp.eq.s32.totalorder %s17, 1
      %p217 = por %p215, %p216
      %p218 = scmp.ne.s32.totalorder %s210, %s213
      %p219 = scmp.eq.s32.totalorder %s17, 0
      %p220 = por %p218, %p219
      %p221 = scmp.ne.s32.totalorder %s210, %s213
      %p222 = scmp.eq.s32.totalorder %s22, 1
      %p223 = por %p221, %p222
      %p224 = scmp.ne.s32.totalorder %s213, %s214
      %p225 = scmp.eq.s32.totalorder %s22, 0
      %p226 = por %p224, %p225
      %p227 = scmp.ne.s32.totalorder %s213, %s214
      %p228 = scmp.eq.s32.totalorder %s23, 1
      %p229 = por %p227, %p228
      %p231 = scmp.ne.s32.totalorder %s214, %s230
      %p232 = scmp.eq.s32.totalorder %s23, 0
      %p233 = por %p231, %p232
      %p234 = scmp.le.s32.totalorder 1, %s17
      %p235 = scmp.lt.s32.totalorder %s17, 3
      %p236 = pnand %p234, %p235
      %p237 = pneg %p236
      // Predicated region
      $region9: #{tpu_custom_call.1} parent=5 // pred_check
        _
      $region10: #{tpu_custom_call.1} parent=5 // pred_check_branch
        %239 = sbr.rel (%p236) target = $region12
      $region11: #{tpu_custom_call.1} parent=5 // pred_region
        %s240 = ssub.s32 %s17, 1
        // Predicated region
        $region13: #{tpu_custom_call.1} parent=11 // pred_check
          %p241 = pneg %p116
        $region14: #{tpu_custom_call.1} parent=11 // pred_check_branch
          %243 = sbr.rel (%p241) target = $region16
        $region15: #{tpu_custom_call.1} parent=11 // pred_region
          _
        $region16: #{tpu_custom_call.1} parent=11 // pred_fallthru
          _
        // Predicated region
        $region17: #{tpu_custom_call.1} parent=11 // pred_check
          %p244 = pneg %p137
        $region18: #{tpu_custom_call.1} parent=11 // pred_check_branch
          %246 = sbr.rel (%p244) target = $region20
        $region19: #{tpu_custom_call.1} parent=11 // pred_region
          _
        $region20: #{tpu_custom_call.1} parent=11 // pred_fallthru
          _
        // Predicated region
        $region21: #{tpu_custom_call.1} parent=11 // pred_check
          %p247 = pneg %p158
        $region22: #{tpu_custom_call.1} parent=11 // pred_check_branch
          %249 = sbr.rel (%p247) target = $region24
        $region23: #{tpu_custom_call.1} parent=11 // pred_region
          _
        $region24: #{tpu_custom_call.1} parent=11 // pred_fallthru
          _
        // Predicated region
        $region25: #{tpu_custom_call.1} parent=11 // pred_check
          %p250 = pneg %p179
        $region26: #{tpu_custom_call.1} parent=11 // pred_check_branch
          %252 = sbr.rel (%p250) target = $region28
        $region27: #{tpu_custom_call.1} parent=11 // pred_region
          _
        $region28: #{tpu_custom_call.1} parent=11 // pred_fallthru
          _
        // Predicated region
        $region29: #{tpu_custom_call.1} parent=11 // pred_check
          %p253 = pneg %p200
        $region30: #{tpu_custom_call.1} parent=11 // pred_check_branch
          %255 = sbr.rel (%p253) target = $region32
        $region31: #{tpu_custom_call.1} parent=11 // pred_region
          _
        $region32: #{tpu_custom_call.1} parent=11 // pred_fallthru
          _
      $region12: #{tpu_custom_call.1} parent=5 // pred_fallthru
        _
      %p256 = scmp.lt.s32.totalorder %s17, 2
      // Predicated region
      $region33: #{tpu_custom_call.1} parent=5 // pred_check
        %p257 = pneg %p256
      $region34: #{tpu_custom_call.1} parent=5 // pred_check_branch
        %259 = sbr.rel (%p257) target = $region36
      $region35: #{tpu_custom_call.1} parent=5 // pred_region
        // Predicated region
        $region37: #{tpu_custom_call.1} parent=35 // pred_check
          %p260 = pneg %p37
        $region38: #{tpu_custom_call.1} parent=35 // pred_check_branch
          %262 = sbr.rel (%p260) target = $region40
        $region39: #{tpu_custom_call.1} parent=35 // pred_region
          %s263 = smul.u32 8, %s17
          %p264 = scmp.lt.s32.totalorder %s263, 15
          %s265 = scalar_select %p264, %s263, 15
          %s266 = smul.addr %s265, 8
          %s267 = scalar_lea.vmem %s0, %s266
          %s268 = smul.u32 8, %s17
        $region40: #{tpu_custom_call.1} parent=35 // pred_fallthru
          _
        // Predicated region
        $region41: #{tpu_custom_call.1} parent=35 // pred_check
          %p269 = pneg %p63
        $region42: #{tpu_custom_call.1} parent=35 // pred_check_branch
          %271 = sbr.rel (%p269) target = $region44
        $region43: #{tpu_custom_call.1} parent=35 // pred_region
          %s272 = smul.u32 8, %s17
          %p273 = scmp.lt.s32.totalorder %s272, 15
          %s274 = scalar_select %p273, %s272, 15
          %s275 = smul.addr %s274, 8
          %s276 = scalar_lea.vmem %s1, %s275
          %s277 = smul.u32 8, %s17
        $region44: #{tpu_custom_call.1} parent=35 // pred_fallthru
          _
        // Predicated region
        $region45: #{tpu_custom_call.1} parent=35 // pred_check
          %p278 = pneg %p89
        $region46: #{tpu_custom_call.1} parent=35 // pred_check_branch
          %280 = sbr.rel (%p278) target = $region48
        $region47: #{tpu_custom_call.1} parent=35 // pred_region
          %p281 = scmp.lt.s32.totalorder %s17, 1
          %s282 = scalar_select %p281, %s17, 1
          %s283 = smul.addr %s282, 8
          %s284 = scalar_lea.vmem %s2, %s283
        $region48: #{tpu_custom_call.1} parent=35 // pred_fallthru
          _
      $region36: #{tpu_custom_call.1} parent=5 // pred_fallthru
        _
      %p285 = scmp.le.s32.totalorder 1, %s17
      %p286 = scmp.lt.s32.totalorder %s17, 3
      %p287 = pnand %p285, %p286
      %p288 = pneg %p287
      // Predicated region
      $region49: #{tpu_custom_call.1} parent=5 // pred_check
        _
      $region50: #{tpu_custom_call.1} parent=5 // pred_check_branch
        %290 = sbr.rel (%p287) target = $region52
      $region51: #{tpu_custom_call.1} parent=5 // pred_region
        %s291 = ssub.s32 %s17, 1
        %s292 = smul.u32 8, %s22
        %p293 = scmp.lt.s32.totalorder %s292, 15
        %s294 = scalar_select %p293, %s292, 15
        %s295 = smul.addr %s294, 8
        %s296 = scalar_lea.vmem %s0, %s295
        %p297 = pneg %p43
        %p298 = pneg %p40
        %s299 = smul.u32 8, %s22
        %p300 = scmp.lt.s32.totalorder %s299, 15
        %s301 = scalar_select %p300, %s299, 15
        %s302 = smul.addr %s301, 8
        %s303 = scalar_lea.vmem %s1, %s302
        %p304 = pneg %p69
        %p305 = pneg %p66
        %p306 = scmp.lt.s32.totalorder %s22, 1
        %s307 = scalar_select %p306, %s22, 1
        %s308 = smul.addr %s307, 8
        %s309 = scalar_lea.vmem %s2, %s308
        %p310 = pneg %p95
        %p311 = pneg %p92
        %p312 = pneg %p116
        %p313 = pneg %p113
        %p314 = pneg %p137
        %p315 = pneg %p134
        %p316 = pneg %p158
        %p317 = pneg %p155
        %p318 = pneg %p179
        %p319 = pneg %p176
        %p320 = pneg %p200
        %p321 = pneg %p197
        %p322 = pneg %p226
        %p323 = pneg %p223
        %s324 = sand.u32 %s213, 1
        %s325 = scalar_lea.sflag [#allocation3], %s324
        %s326 = sand.u32 %s213, 1
        %s327 = smul.addr %s326, 8
        %s328 = scalar_lea.vmem [#allocation2], %s327
        %s329 = smul.u32 8, %s22
        %p330 = scmp.lt.s32.totalorder %s329, 15
        %s331 = scalar_select %p330, %s329, 15
        %s332 = smul.addr %s331, 8
        %s333 = scalar_lea.vmem %s0, %s332
        %s334 = smul.u32 8, %s22
        %s335 = smul.u32 8, %s22
        %p336 = scmp.lt.s32.totalorder %s335, 15
        %s337 = scalar_select %p336, %s335, 15
        %s338 = smul.addr %s337, 8
        %s339 = scalar_lea.vmem %s1, %s338
        %s340 = smul.u32 8, %s22
        %p341 = scmp.lt.s32.totalorder %s22, 1
        %s342 = scalar_select %p341, %s22, 1
        %s343 = smul.addr %s342, 8
        %s344 = scalar_lea.vmem %s2, %s343
        %v345 = vld [vmem:[%s333] sm:$0xff]
        %v346 = vld [vmem:[%s333 + $0x8] sm:$0xff]
        %v347 = vld [vmem:[%s333 + $0x10] sm:$0xff]
        %v348 = vld [vmem:[%s333 + $0x18] sm:$0xff]
        %v349 = vld [vmem:[%s333 + $0x20] sm:$0xff]
        %v350 = vld [vmem:[%s333 + $0x28] sm:$0xff]
        %v351 = vld [vmem:[%s333 + $0x30] sm:$0xff]
        %v352 = vld [vmem:[%s333 + $0x38] sm:$0xff]
        %v353 = vld [vmem:[%s344] sm:$0xff]
        %v354 = vld [vmem:[%s3] sm:$0xff]
        %v355 = vld [vmem:[%s3 + $0x8] sm:$0xff]
        %v356 = vld [vmem:[%s4] sm:$0xff]
        %v357 = vld [vmem:[%s4 + $0x8] sm:$0xff]
        %v358 = vld [vmem:[%s4 + $0x10] sm:$0xff]
        %v359 = vld [vmem:[%s4 + $0x18] sm:$0xff]
        %v360 = vld [vmem:[%s6] sm:$0x1]
        %v361 = vld [vmem:[%s339] sm:$0xff]
        %v362 = vld [vmem:[%s339 + $0x8] sm:$0xff]
        %v363 = vld [vmem:[%s339 + $0x10] sm:$0xff]
        %v364 = vld [vmem:[%s339 + $0x18] sm:$0xff]
        %v365 = vld [vmem:[%s339 + $0x20] sm:$0xff]
        %v366 = vld [vmem:[%s339 + $0x28] sm:$0xff]
        %v367 = vld [vmem:[%s339 + $0x30] sm:$0xff]
        %v368 = vld [vmem:[%s339 + $0x38] sm:$0xff]
        %vm369 = vcmask 130048
        %v371 = vsel %vm369, %v361, 0
        %v374 = vsel %vm369, %v362, 0
        %v377 = vsel %vm369, %v363, 0
        %v380 = vsel %vm369, %v364, 0
        %v383 = vsel %vm369, %v365, 0
        %v386 = vsel %vm369, %v366, 0
        %v389 = vsel %vm369, %v367, 0
        %v392 = vsel %vm369, %v368, 0
        %394 = vmatpush.msra.mxu0 0.0
        %395 = vmatpush.msra.mxu0 0.0
        %396 = vmatpush.msra.mxu0 0.0
        %397 = vmatpush.msra.mxu0 0.0
        %398 = vmatpush.msra.mxu0 0.0
        %399 = vmatpush.msra.mxu0 0.0
        %400 = vmatpush.msra.mxu0 0.0
        %401 = vmatpush.msra.mxu0 0.0
        %402 = vmatpush.msra.mxu0 0.0
        %403 = vmatpush.msra.mxu0 0.0
        %404 = vmatpush.msra.mxu0 0.0
        %405 = vmatpush.msra.mxu0 0.0
        %406 = vmatpush.msra.mxu0 0.0
        %407 = vmatpush.msra.mxu0 0.0
        %408 = vmatpush.msra.mxu0 %v355
        %409 = vmatpush.msra.mxu0 %v354
        %410 = vmatmul.f32.gmra.mxu0 %v371
        %v411 = vpop.f32.mrf.mxu0
        %v412 = vadd.f32 0.0, %v411
        %413 = vmatmul.f32.gmra.mxu0 %v374
        %v414 = vpop.f32.mrf.mxu0
        %v415 = vadd.f32 0.0, %v414
        %416 = vmatmul.f32.gmra.mxu0 %v377
        %v417 = vpop.f32.mrf.mxu0
        %v418 = vadd.f32 0.0, %v417
        %419 = vmatmul.f32.gmra.mxu0 %v380
        %v420 = vpop.f32.mrf.mxu0
        %v421 = vadd.f32 0.0, %v420
        %422 = vmatmul.f32.gmra.mxu0 %v383
        %v423 = vpop.f32.mrf.mxu0
        %v424 = vadd.f32 0.0, %v423
        %425 = vmatmul.f32.gmra.mxu0 %v386
        %v426 = vpop.f32.mrf.mxu0
        %v427 = vadd.f32 0.0, %v426
        %428 = vmatmul.f32.gmra.mxu0 %v389
        %v429 = vpop.f32.mrf.mxu0
        %v430 = vadd.f32 0.0, %v429
        %431 = vmatmul.f32.gmra.mxu0 %v392
        %v432 = vpop.f32.mrf.mxu0
        %v433 = vadd.f32 0.0, %v432
        %434 = vdwg.mxu0
        %v436 = vperm.slane %v360, 0
        %vm438 = vcmask 64512
        %v440 = vsel %vm438, %v345, 0
        %442 = vmatpush.msra.mxu0 0.0
        %443 = vmatpush.msra.mxu0 0.0
        %444 = vmatpush.msra.mxu0 0.0
        %445 = vmatpush.msra.mxu0 0.0
        %446 = vmatpush.msra.mxu0 0.0
        %447 = vmatpush.msra.mxu0 0.0
        %448 = vmatpush.msra.mxu0 0.0
        %449 = vmatpush.msra.mxu0 0.0
        %450 = vmatpush.msra.mxu0 0.0
        %451 = vmatpush.msra.mxu0 0.0
        %452 = vmatpush.msra.mxu0 0.0
        %453 = vmatpush.msra.mxu0 0.0
        %454 = vmatpush.msra.mxu0 0.0
        %455 = vmatpush.msra.mxu0 0.0
        %456 = vmatpush.msra.mxu0 0.0
        %457 = vmatpush.msra.mxu0 %v412
        %458 = vmatmul.f32.gmra.mxu0 %v440
        %v459 = vpop.f32.mrf.mxu0
        %v460 = vadd.f32 %v436, %v459
        %461 = vdwg.mxu0
        %v463 = vsel %vm438, %v346, 0
        %465 = vmatpush.msra.mxu0 0.0
        %466 = vmatpush.msra.mxu0 0.0
        %467 = vmatpush.msra.mxu0 0.0
        %468 = vmatpush.msra.mxu0 0.0
        %469 = vmatpush.msra.mxu0 0.0
        %470 = vmatpush.msra.mxu0 0.0
        %471 = vmatpush.msra.mxu0 0.0
        %472 = vmatpush.msra.mxu0 0.0
        %473 = vmatpush.msra.mxu0 0.0
        %474 = vmatpush.msra.mxu0 0.0
        %475 = vmatpush.msra.mxu0 0.0
        %476 = vmatpush.msra.mxu0 0.0
        %477 = vmatpush.msra.mxu0 0.0
        %478 = vmatpush.msra.mxu0 0.0
        %479 = vmatpush.msra.mxu0 0.0
        %480 = vmatpush.msra.mxu0 %v415
        %481 = vmatmul.f32.gmra.mxu0 %v463
        %v482 = vpop.f32.mrf.mxu0
        %v483 = vadd.f32 %v436, %v482
        %484 = vdwg.mxu0
        %v486 = vsel %vm438, %v347, 0
        %488 = vmatpush.msra.mxu0 0.0
        %489 = vmatpush.msra.mxu0 0.0
        %490 = vmatpush.msra.mxu0 0.0
        %491 = vmatpush.msra.mxu0 0.0
        %492 = vmatpush.msra.mxu0 0.0
        %493 = vmatpush.msra.mxu0 0.0
        %494 = vmatpush.msra.mxu0 0.0
        %495 = vmatpush.msra.mxu0 0.0
        %496 = vmatpush.msra.mxu0 0.0
        %497 = vmatpush.msra.mxu0 0.0
        %498 = vmatpush.msra.mxu0 0.0
        %499 = vmatpush.msra.mxu0 0.0
        %500 = vmatpush.msra.mxu0 0.0
        %501 = vmatpush.msra.mxu0 0.0
        %502 = vmatpush.msra.mxu0 0.0
        %503 = vmatpush.msra.mxu0 %v418
        %504 = vmatmul.f32.gmra.mxu0 %v486
        %v505 = vpop.f32.mrf.mxu0
        %v506 = vadd.f32 %v436, %v505
        %507 = vdwg.mxu0
        %v509 = vsel %vm438, %v348, 0
        %511 = vmatpush.msra.mxu0 0.0
        %512 = vmatpush.msra.mxu0 0.0
        %513 = vmatpush.msra.mxu0 0.0
        %514 = vmatpush.msra.mxu0 0.0
        %515 = vmatpush.msra.mxu0 0.0
        %516 = vmatpush.msra.mxu0 0.0
        %517 = vmatpush.msra.mxu0 0.0
        %518 = vmatpush.msra.mxu0 0.0
        %519 = vmatpush.msra.mxu0 0.0
        %520 = vmatpush.msra.mxu0 0.0
        %521 = vmatpush.msra.mxu0 0.0
        %522 = vmatpush.msra.mxu0 0.0
        %523 = vmatpush.msra.mxu0 0.0
        %524 = vmatpush.msra.mxu0 0.0
        %525 = vmatpush.msra.mxu0 0.0
        %526 = vmatpush.msra.mxu0 %v421
        %527 = vmatmul.f32.gmra.mxu0 %v509
        %v528 = vpop.f32.mrf.mxu0
        %v529 = vadd.f32 %v436, %v528
        %530 = vdwg.mxu0
        %v532 = vsel %vm438, %v349, 0
        %534 = vmatpush.msra.mxu0 0.0
        %535 = vmatpush.msra.mxu0 0.0
        %536 = vmatpush.msra.mxu0 0.0
        %537 = vmatpush.msra.mxu0 0.0
        %538 = vmatpush.msra.mxu0 0.0
        %539 = vmatpush.msra.mxu0 0.0
        %540 = vmatpush.msra.mxu0 0.0
        %541 = vmatpush.msra.mxu0 0.0
        %542 = vmatpush.msra.mxu0 0.0
        %543 = vmatpush.msra.mxu0 0.0
        %544 = vmatpush.msra.mxu0 0.0
        %545 = vmatpush.msra.mxu0 0.0
        %546 = vmatpush.msra.mxu0 0.0
        %547 = vmatpush.msra.mxu0 0.0
        %548 = vmatpush.msra.mxu0 0.0
        %549 = vmatpush.msra.mxu0 %v424
        %550 = vmatmul.f32.gmra.mxu0 %v532
        %v551 = vpop.f32.mrf.mxu0
        %v552 = vadd.f32 %v436, %v551
        %553 = vdwg.mxu0
        %v555 = vsel %vm438, %v350, 0
        %557 = vmatpush.msra.mxu0 0.0
        %558 = vmatpush.msra.mxu0 0.0
        %559 = vmatpush.msra.mxu0 0.0
        %560 = vmatpush.msra.mxu0 0.0
        %561 = vmatpush.msra.mxu0 0.0
        %562 = vmatpush.msra.mxu0 0.0
        %563 = vmatpush.msra.mxu0 0.0
        %564 = vmatpush.msra.mxu0 0.0
        %565 = vmatpush.msra.mxu0 0.0
        %566 = vmatpush.msra.mxu0 0.0
        %567 = vmatpush.msra.mxu0 0.0
        %568 = vmatpush.msra.mxu0 0.0
        %569 = vmatpush.msra.mxu0 0.0
        %570 = vmatpush.msra.mxu0 0.0
        %571 = vmatpush.msra.mxu0 0.0
        %572 = vmatpush.msra.mxu0 %v427
        %573 = vmatmul.f32.gmra.mxu0 %v555
        %v574 = vpop.f32.mrf.mxu0
        %v575 = vadd.f32 %v436, %v574
        %576 = vdwg.mxu0
        %v578 = vsel %vm438, %v351, 0
        %580 = vmatpush.msra.mxu0 0.0
        %581 = vmatpush.msra.mxu0 0.0
        %582 = vmatpush.msra.mxu0 0.0
        %583 = vmatpush.msra.mxu0 0.0
        %584 = vmatpush.msra.mxu0 0.0
        %585 = vmatpush.msra.mxu0 0.0
        %586 = vmatpush.msra.mxu0 0.0
        %587 = vmatpush.msra.mxu0 0.0
        %588 = vmatpush.msra.mxu0 0.0
        %589 = vmatpush.msra.mxu0 0.0
        %590 = vmatpush.msra.mxu0 0.0
        %591 = vmatpush.msra.mxu0 0.0
        %592 = vmatpush.msra.mxu0 0.0
        %593 = vmatpush.msra.mxu0 0.0
        %594 = vmatpush.msra.mxu0 0.0
        %595 = vmatpush.msra.mxu0 %v430
        %596 = vmatmul.f32.gmra.mxu0 %v578
        %v597 = vpop.f32.mrf.mxu0
        %v598 = vadd.f32 %v436, %v597
        %599 = vdwg.mxu0
        %v601 = vsel %vm438, %v352, 0
        %603 = vmatpush.msra.mxu0 0.0
        %604 = vmatpush.msra.mxu0 0.0
        %605 = vmatpush.msra.mxu0 0.0
        %606 = vmatpush.msra.mxu0 0.0
        %607 = vmatpush.msra.mxu0 0.0
        %608 = vmatpush.msra.mxu0 0.0
        %609 = vmatpush.msra.mxu0 0.0
        %610 = vmatpush.msra.mxu0 0.0
        %611 = vmatpush.msra.mxu0 0.0
        %612 = vmatpush.msra.mxu0 0.0
        %613 = vmatpush.msra.mxu0 0.0
        %614 = vmatpush.msra.mxu0 0.0
        %615 = vmatpush.msra.mxu0 0.0
        %616 = vmatpush.msra.mxu0 0.0
        %617 = vmatpush.msra.mxu0 0.0
        %618 = vmatpush.msra.mxu0 %v433
        %619 = vmatmul.f32.gmra.mxu0 %v601
        %v620 = vpop.f32.mrf.mxu0
        %v621 = vadd.f32 %v436, %v620
        %622 = vdwg.mxu0
        %v623 = vmax.f32 %v460, 0.0
        %v624 = vmax.f32 %v483, 0.0
        %v625 = vmax.f32 %v506, 0.0
        %v626 = vmax.f32 %v529, 0.0
        %v627 = vmax.f32 %v552, 0.0
        %v628 = vmax.f32 %v575, 0.0
        %v629 = vmax.f32 %v598, 0.0
        %v630 = vmax.f32 %v621, 0.0
        %vm631 = vcmask 261120
        %v633 = vsel %vm631, %v623, 0
        %v636 = vsel %vm631, %v624, 0
        %v639 = vsel %vm631, %v625, 0
        %v642 = vsel %vm631, %v626, 0
        %v645 = vsel %vm631, %v627, 0
        %v648 = vsel %vm631, %v628, 0
        %v651 = vsel %vm631, %v629, 0
        %v654 = vsel %vm631, %v630, 0
        %656 = vmatpush.msra.mxu0 0.0
        %657 = vmatpush.msra.mxu0 0.0
        %658 = vmatpush.msra.mxu0 0.0
        %659 = vmatpush.msra.mxu0 0.0
        %660 = vmatpush.msra.mxu0 0.0
        %661 = vmatpush.msra.mxu0 0.0
        %662 = vmatpush.msra.mxu0 0.0
        %663 = vmatpush.msra.mxu0 0.0
        %664 = vmatpush.msra.mxu0 0.0
        %665 = vmatpush.msra.mxu0 0.0
        %666 = vmatpush.msra.mxu0 0.0
        %667 = vmatpush.msra.mxu0 0.0
        %668 = vmatpush.msra.mxu0 %v359
        %669 = vmatpush.msra.mxu0 %v358
        %670 = vmatpush.msra.mxu0 %v357
        %671 = vmatpush.msra.mxu0 %v356
        %672 = vmatmul.f32.gmra.mxu0 %v633
        %v673 = vpop.f32.mrf.mxu0
        %v674 = vadd.f32 0.0, %v673
        %675 = vmatmul.f32.gmra.mxu0 %v636
        %v676 = vpop.f32.mrf.mxu0
        %v677 = vadd.f32 0.0, %v676
        %678 = vmatmul.f32.gmra.mxu0 %v639
        %v679 = vpop.f32.mrf.mxu0
        %v680 = vadd.f32 0.0, %v679
        %681 = vmatmul.f32.gmra.mxu0 %v642
        %v682 = vpop.f32.mrf.mxu0
        %v683 = vadd.f32 0.0, %v682
        %684 = vmatmul.f32.gmra.mxu0 %v645
        %v685 = vpop.f32.mrf.mxu0
        %v686 = vadd.f32 0.0, %v685
        %687 = vmatmul.f32.gmra.mxu0 %v648
        %v688 = vpop.f32.mrf.mxu0
        %v689 = vadd.f32 0.0, %v688
        %690 = vmatmul.f32.gmra.mxu0 %v651
        %v691 = vpop.f32.mrf.mxu0
        %v692 = vadd.f32 0.0, %v691
        %693 = vmatmul.f32.gmra.mxu0 %v654
        %v694 = vpop.f32.mrf.mxu0
        %v695 = vadd.f32 0.0, %v694
        %696 = vdwg.mxu0
        %697 = vrot.lane.b32.xlu0 %v436, 96
        %v698 = vpop.permute.xlu0 %697
        %700 = vmatpush.msra.mxu0 0.0
        %701 = vmatpush.msra.mxu0 0.0
        %702 = vmatpush.msra.mxu0 0.0
        %703 = vmatpush.msra.mxu0 0.0
        %704 = vmatpush.msra.mxu0 0.0
        %705 = vmatpush.msra.mxu0 0.0
        %706 = vmatpush.msra.mxu0 0.0
        %707 = vmatpush.msra.mxu0 0.0
        %708 = vmatpush.msra.mxu0 0.0
        %709 = vmatpush.msra.mxu0 0.0
        %710 = vmatpush.msra.mxu0 0.0
        %711 = vmatpush.msra.mxu0 0.0
        %712 = vmatpush.msra.mxu0 0.0
        %713 = vmatpush.msra.mxu0 0.0
        %714 = vmatpush.msra.mxu0 0.0
        %715 = vmatpush.msra.mxu0 %v674
        %716 = vmatmul.f32.gmra.mxu0 %v440
        %v717 = vpop.f32.mrf.mxu0
        %v718 = vadd.f32 %v698, %v717
        %719 = vdwg.mxu0
        %720 = vmatpush.msra.mxu0 0.0
        %721 = vmatpush.msra.mxu0 0.0
        %722 = vmatpush.msra.mxu0 0.0
        %723 = vmatpush.msra.mxu0 0.0
        %724 = vmatpush.msra.mxu0 0.0
        %725 = vmatpush.msra.mxu0 0.0
        %726 = vmatpush.msra.mxu0 0.0
        %727 = vmatpush.msra.mxu0 0.0
        %728 = vmatpush.msra.mxu0 0.0
        %729 = vmatpush.msra.mxu0 0.0
        %730 = vmatpush.msra.mxu0 0.0
        %731 = vmatpush.msra.mxu0 0.0
        %732 = vmatpush.msra.mxu0 0.0
        %733 = vmatpush.msra.mxu0 0.0
        %734 = vmatpush.msra.mxu0 0.0
        %735 = vmatpush.msra.mxu0 %v677
        %736 = vmatmul.f32.gmra.mxu0 %v463
        %v737 = vpop.f32.mrf.mxu0
        %v738 = vadd.f32 %v698, %v737
        %739 = vdwg.mxu0
        %740 = vmatpush.msra.mxu0 0.0
        %741 = vmatpush.msra.mxu0 0.0
        %742 = vmatpush.msra.mxu0 0.0
        %743 = vmatpush.msra.mxu0 0.0
        %744 = vmatpush.msra.mxu0 0.0
        %745 = vmatpush.msra.mxu0 0.0
        %746 = vmatpush.msra.mxu0 0.0
        %747 = vmatpush.msra.mxu0 0.0
        %748 = vmatpush.msra.mxu0 0.0
        %749 = vmatpush.msra.mxu0 0.0
        %750 = vmatpush.msra.mxu0 0.0
        %751 = vmatpush.msra.mxu0 0.0
        %752 = vmatpush.msra.mxu0 0.0
        %753 = vmatpush.msra.mxu0 0.0
        %754 = vmatpush.msra.mxu0 0.0
        %755 = vmatpush.msra.mxu0 %v680
        %756 = vmatmul.f32.gmra.mxu0 %v486
        %v757 = vpop.f32.mrf.mxu0
        %v758 = vadd.f32 %v698, %v757
        %759 = vdwg.mxu0
        %760 = vmatpush.msra.mxu0 0.0
        %761 = vmatpush.msra.mxu0 0.0
        %762 = vmatpush.msra.mxu0 0.0
        %763 = vmatpush.msra.mxu0 0.0
        %764 = vmatpush.msra.mxu0 0.0
        %765 = vmatpush.msra.mxu0 0.0
        %766 = vmatpush.msra.mxu0 0.0
        %767 = vmatpush.msra.mxu0 0.0
        %768 = vmatpush.msra.mxu0 0.0
        %769 = vmatpush.msra.mxu0 0.0
        %770 = vmatpush.msra.mxu0 0.0
        %771 = vmatpush.msra.mxu0 0.0
        %772 = vmatpush.msra.mxu0 0.0
        %773 = vmatpush.msra.mxu0 0.0
        %774 = vmatpush.msra.mxu0 0.0
        %775 = vmatpush.msra.mxu0 %v683
        %776 = vmatmul.f32.gmra.mxu0 %v509
        %v777 = vpop.f32.mrf.mxu0
        %v778 = vadd.f32 %v698, %v777
        %779 = vdwg.mxu0
        %780 = vmatpush.msra.mxu0 0.0
        %781 = vmatpush.msra.mxu0 0.0
        %782 = vmatpush.msra.mxu0 0.0
        %783 = vmatpush.msra.mxu0 0.0
        %784 = vmatpush.msra.mxu0 0.0
        %785 = vmatpush.msra.mxu0 0.0
        %786 = vmatpush.msra.mxu0 0.0
        %787 = vmatpush.msra.mxu0 0.0
        %788 = vmatpush.msra.mxu0 0.0
        %789 = vmatpush.msra.mxu0 0.0
        %790 = vmatpush.msra.mxu0 0.0
        %791 = vmatpush.msra.mxu0 0.0
        %792 = vmatpush.msra.mxu0 0.0
        %793 = vmatpush.msra.mxu0 0.0
        %794 = vmatpush.msra.mxu0 0.0
        %795 = vmatpush.msra.mxu0 %v686
        %796 = vmatmul.f32.gmra.mxu0 %v532
        %v797 = vpop.f32.mrf.mxu0
        %v798 = vadd.f32 %v698, %v797
        %799 = vdwg.mxu0
        %800 = vmatpush.msra.mxu0 0.0
        %801 = vmatpush.msra.mxu0 0.0
        %802 = vmatpush.msra.mxu0 0.0
        %803 = vmatpush.msra.mxu0 0.0
        %804 = vmatpush.msra.mxu0 0.0
        %805 = vmatpush.msra.mxu0 0.0
        %806 = vmatpush.msra.mxu0 0.0
        %807 = vmatpush.msra.mxu0 0.0
        %808 = vmatpush.msra.mxu0 0.0
        %809 = vmatpush.msra.mxu0 0.0
        %810 = vmatpush.msra.mxu0 0.0
        %811 = vmatpush.msra.mxu0 0.0
        %812 = vmatpush.msra.mxu0 0.0
        %813 = vmatpush.msra.mxu0 0.0
        %814 = vmatpush.msra.mxu0 0.0
        %815 = vmatpush.msra.mxu0 %v689
        %816 = vmatmul.f32.gmra.mxu0 %v555
        %v817 = vpop.f32.mrf.mxu0
        %v818 = vadd.f32 %v698, %v817
        %819 = vdwg.mxu0
        %820 = vmatpush.msra.mxu0 0.0
        %821 = vmatpush.msra.mxu0 0.0
        %822 = vmatpush.msra.mxu0 0.0
        %823 = vmatpush.msra.mxu0 0.0
        %824 = vmatpush.msra.mxu0 0.0
        %825 = vmatpush.msra.mxu0 0.0
        %826 = vmatpush.msra.mxu0 0.0
        %827 = vmatpush.msra.mxu0 0.0
        %828 = vmatpush.msra.mxu0 0.0
        %829 = vmatpush.msra.mxu0 0.0
        %830 = vmatpush.msra.mxu0 0.0
        %831 = vmatpush.msra.mxu0 0.0
        %832 = vmatpush.msra.mxu0 0.0
        %833 = vmatpush.msra.mxu0 0.0
        %834 = vmatpush.msra.mxu0 0.0
        %835 = vmatpush.msra.mxu0 %v692
        %836 = vmatmul.f32.gmra.mxu0 %v578
        %v837 = vpop.f32.mrf.mxu0
        %v838 = vadd.f32 %v698, %v837
        %839 = vdwg.mxu0
        %840 = vmatpush.msra.mxu0 0.0
        %841 = vmatpush.msra.mxu0 0.0
        %842 = vmatpush.msra.mxu0 0.0
        %843 = vmatpush.msra.mxu0 0.0
        %844 = vmatpush.msra.mxu0 0.0
        %845 = vmatpush.msra.mxu0 0.0
        %846 = vmatpush.msra.mxu0 0.0
        %847 = vmatpush.msra.mxu0 0.0
        %848 = vmatpush.msra.mxu0 0.0
        %849 = vmatpush.msra.mxu0 0.0
        %850 = vmatpush.msra.mxu0 0.0
        %851 = vmatpush.msra.mxu0 0.0
        %852 = vmatpush.msra.mxu0 0.0
        %853 = vmatpush.msra.mxu0 0.0
        %854 = vmatpush.msra.mxu0 0.0
        %855 = vmatpush.msra.mxu0 %v695
        %856 = vmatmul.f32.gmra.mxu0 %v601
        %v857 = vpop.f32.mrf.mxu0
        %v858 = vadd.f32 %v698, %v857
        %859 = vdwg.mxu0
        %v860 = vmax.f32 %v718, 0.0
        %v861 = vmax.f32 %v738, 0.0
        %v862 = vmax.f32 %v758, 0.0
        %v863 = vmax.f32 %v778, 0.0
        %v864 = vmax.f32 %v798, 0.0
        %v865 = vmax.f32 %v818, 0.0
        %v866 = vmax.f32 %v838, 0.0
        %v867 = vmax.f32 %v858, 0.0
        %v868 = vlaneseq
        %v869 = vshrl.u32 %v868, 7
        %v870 = vcvt.f32.s32.to.zero.pseudo %v353
        %v871 = vrot.slane %v870, 1
        %v872 = vrot.slane %v870, 2
        %v873 = vrot.slane %v870, 3
        %v874 = vrot.slane %v870, 4
        %v875 = vrot.slane %v870, 5
        %v876 = vrot.slane %v870, 6
        %v877 = vrot.slane %v870, 7
        %v878 = vperm.slane %v870, 0
        %v879 = vperm.slane %v871, 0
        %v880 = vperm.slane %v872, 0
        %v881 = vperm.slane %v873, 0
        %v882 = vperm.slane %v874, 0
        %v883 = vperm.slane %v875, 0
        %v884 = vperm.slane %v876, 0
        %v885 = vperm.slane %v877, 0
        %886 = vset.pattern.permute.xlu0 0
        %887 = vperm.xlu0 %886, %v878
        %v888 = vpop.permute.xlu0 %887
        %889 = vset.pattern.permute.xlu0 0
        %890 = vperm.xlu0 %889, %v879
        %v891 = vpop.permute.xlu0 %890
        %892 = vset.pattern.permute.xlu0 0
        %893 = vperm.xlu0 %892, %v880
        %v894 = vpop.permute.xlu0 %893
        %895 = vset.pattern.permute.xlu0 0
        %896 = vperm.xlu0 %895, %v881
        %v897 = vpop.permute.xlu0 %896
        %898 = vset.pattern.permute.xlu0 0
        %899 = vperm.xlu0 %898, %v882
        %v900 = vpop.permute.xlu0 %899
        %901 = vset.pattern.permute.xlu0 0
        %902 = vperm.xlu0 %901, %v883
        %v903 = vpop.permute.xlu0 %902
        %904 = vset.pattern.permute.xlu0 0
        %905 = vperm.xlu0 %904, %v884
        %v906 = vpop.permute.xlu0 %905
        %907 = vset.pattern.permute.xlu0 0
        %908 = vperm.xlu0 %907, %v885
        %v909 = vpop.permute.xlu0 %908
        %vm910 = vcmp.lt.s32.totalorder %v869, %v888
        %vm911 = vcmp.lt.s32.totalorder %v869, %v891
        %vm912 = vcmp.lt.s32.totalorder %v869, %v894
        %vm913 = vcmp.lt.s32.totalorder %v869, %v897
        %vm914 = vcmp.lt.s32.totalorder %v869, %v900
        %vm915 = vcmp.lt.s32.totalorder %v869, %v903
        %vm916 = vcmp.lt.s32.totalorder %v869, %v906
        %vm917 = vcmp.lt.s32.totalorder %v869, %v909
        %v918 = vsel %vm910, 1, 0
        %v919 = vsel %vm911, 1, 0
        %v920 = vsel %vm912, 1, 0
        %v921 = vsel %vm913, 1, 0
        %v922 = vsel %vm914, 1, 0
        %v923 = vsel %vm915, 1, 0
        %v924 = vsel %vm916, 1, 0
        %v925 = vsel %vm917, 1, 0
        %v926 = vcvt.s32.f32 %v918
        %v927 = vcvt.s32.f32 %v919
        %v928 = vcvt.s32.f32 %v920
        %v929 = vcvt.s32.f32 %v921
        %v930 = vcvt.s32.f32 %v922
        %v931 = vcvt.s32.f32 %v923
        %v932 = vcvt.s32.f32 %v924
        %v933 = vcvt.s32.f32 %v925
        %v934 = vmul.f32 %v860, %v926
        %v935 = vmul.f32 %v861, %v927
        %v936 = vmul.f32 %v862, %v928
        %v937 = vmul.f32 %v863, %v929
        %v938 = vmul.f32 %v864, %v930
        %v939 = vmul.f32 %v865, %v931
        %v940 = vmul.f32 %v866, %v932
        %v941 = vmul.f32 %v867, %v933
        %v942 = vsel %vm631, %v934, 0.0
        %v943 = vrot.slane %v942, 4
        %v944 = vadd.f32 %v942, %v943
        %v945 = vrot.slane %v944, 2
        %v946 = vadd.f32 %v944, %v945
        %v947 = vrot.slane %v946, 1
        %v948 = vadd.f32 %v946, %v947
        %v949 = vsel %vm631, %v935, 0.0
        %v950 = vrot.slane %v949, 4
        %v951 = vadd.f32 %v949, %v950
        %v952 = vrot.slane %v951, 2
        %v953 = vadd.f32 %v951, %v952
        %v954 = vrot.slane %v953, 1
        %v955 = vadd.f32 %v953, %v954
        %v956 = vsel %vm631, %v936, 0.0
        %v957 = vrot.slane %v956, 4
        %v958 = vadd.f32 %v956, %v957
        %v959 = vrot.slane %v958, 2
        %v960 = vadd.f32 %v958, %v959
        %v961 = vrot.slane %v960, 1
        %v962 = vadd.f32 %v960, %v961
        %v963 = vsel %vm631, %v937, 0.0
        %v964 = vrot.slane %v963, 4
        %v965 = vadd.f32 %v963, %v964
        %v966 = vrot.slane %v965, 2
        %v967 = vadd.f32 %v965, %v966
        %v968 = vrot.slane %v967, 1
        %v969 = vadd.f32 %v967, %v968
        %v970 = vsel %vm631, %v938, 0.0
        %v971 = vrot.slane %v970, 4
        %v972 = vadd.f32 %v970, %v971
        %v973 = vrot.slane %v972, 2
        %v974 = vadd.f32 %v972, %v973
        %v975 = vrot.slane %v974, 1
        %v976 = vadd.f32 %v974, %v975
        %v977 = vsel %vm631, %v939, 0.0
        %v978 = vrot.slane %v977, 4
        %v979 = vadd.f32 %v977, %v978
        %v980 = vrot.slane %v979, 2
        %v981 = vadd.f32 %v979, %v980
        %v982 = vrot.slane %v981, 1
        %v983 = vadd.f32 %v981, %v982
        %v984 = vsel %vm631, %v940, 0.0
        %v985 = vrot.slane %v984, 4
        %v986 = vadd.f32 %v984, %v985
        %v987 = vrot.slane %v986, 2
        %v988 = vadd.f32 %v986, %v987
        %v989 = vrot.slane %v988, 1
        %v990 = vadd.f32 %v988, %v989
        %v991 = vsel %vm631, %v941, 0.0
        %v992 = vrot.slane %v991, 4
        %v993 = vadd.f32 %v991, %v992
        %v994 = vrot.slane %v993, 2
        %v995 = vadd.f32 %v993, %v994
        %v996 = vrot.slane %v995, 1
        %v997 = vadd.f32 %v995, %v996
        %999 = vset.pattern.permute.xlu0 0
        %1000 = vperm.xlu0 %999, %v353
        %v1001 = vpop.permute.xlu0 %1000
        %v1002 = vrot.slane %v1001, 1
        %v1003 = vrot.slane %v1001, 2
        %v1004 = vrot.slane %v1001, 3
        %v1005 = vrot.slane %v1001, 4
        %v1006 = vrot.slane %v1001, 5
        %v1007 = vrot.slane %v1001, 6
        %v1008 = vrot.slane %v1001, 7
        %v1017 = vrcp.pop %v1001
        %v1018 = vmul.f32 %v1001, %v1017
        %v1019 = vsub.f32 1.0, %v1018
        %v1020 = vmul.f32 %v1017, %v1019
        %v1021 = vadd.f32 %v1017, %v1020
        %vm1022 = vweird.f32 %v1001
        %vm1023 = vweird.f32 %v1017
        %vm1024 = vmor %vm1022, %vm1023
        %v1025 = vsel %vm1024, %v1017, %v1021
        %v1026 = vand.u32 2147483647, %v1001
        %vm1027 = vcmp.eq.f32.partialorder %v1026, 8.507059e+37
        %v1028 = vand.u32 %v1001, 2147483648
        %v1029 = vor.u32 1.1754944e-38, %v1028
        %v1030 = vsel %vm1027, %v1029, %v1025
        %v1031 = vmul.f32 %v948, %v1030
        %v1032 = vrcp.pop %v1002
        %v1033 = vmul.f32 %v1002, %v1032
        %v1034 = vsub.f32 1.0, %v1033
        %v1035 = vmul.f32 %v1032, %v1034
        %v1036 = vadd.f32 %v1032, %v1035
        %vm1037 = vweird.f32 %v1002
        %vm1038 = vweird.f32 %v1032
        %vm1039 = vmor %vm1037, %vm1038
        %v1040 = vsel %vm1039, %v1032, %v1036
        %v1041 = vand.u32 2147483647, %v1002
        %vm1042 = vcmp.eq.f32.partialorder %v1041, 8.507059e+37
        %v1043 = vand.u32 %v1002, 2147483648
        %v1044 = vor.u32 1.1754944e-38, %v1043
        %v1045 = vsel %vm1042, %v1044, %v1040
        %v1046 = vmul.f32 %v955, %v1045
        %v1047 = vrcp.pop %v1003
        %v1048 = vmul.f32 %v1003, %v1047
        %v1049 = vsub.f32 1.0, %v1048
        %v1050 = vmul.f32 %v1047, %v1049
        %v1051 = vadd.f32 %v1047, %v1050
        %vm1052 = vweird.f32 %v1003
        %vm1053 = vweird.f32 %v1047
        %vm1054 = vmor %vm1052, %vm1053
        %v1055 = vsel %vm1054, %v1047, %v1051
        %v1056 = vand.u32 2147483647, %v1003
        %vm1057 = vcmp.eq.f32.partialorder %v1056, 8.507059e+37
        %v1058 = vand.u32 %v1003, 2147483648
        %v1059 = vor.u32 1.1754944e-38, %v1058
        %v1060 = vsel %vm1057, %v1059, %v1055
        %v1061 = vmul.f32 %v962, %v1060
        %v1062 = vrcp.pop %v1004
        %v1063 = vmul.f32 %v1004, %v1062
        %v1064 = vsub.f32 1.0, %v1063
        %v1065 = vmul.f32 %v1062, %v1064
        %v1066 = vadd.f32 %v1062, %v1065
        %vm1067 = vweird.f32 %v1004
        %vm1068 = vweird.f32 %v1062
        %vm1069 = vmor %vm1067, %vm1068
        %v1070 = vsel %vm1069, %v1062, %v1066
        %v1071 = vand.u32 2147483647, %v1004
        %vm1072 = vcmp.eq.f32.partialorder %v1071, 8.507059e+37
        %v1073 = vand.u32 %v1004, 2147483648
        %v1074 = vor.u32 1.1754944e-38, %v1073
        %v1075 = vsel %vm1072, %v1074, %v1070
        %v1076 = vmul.f32 %v969, %v1075
        %v1077 = vrcp.pop %v1005
        %v1078 = vmul.f32 %v1005, %v1077
        %v1079 = vsub.f32 1.0, %v1078
        %v1080 = vmul.f32 %v1077, %v1079
        %v1081 = vadd.f32 %v1077, %v1080
        %vm1082 = vweird.f32 %v1005
        %vm1083 = vweird.f32 %v1077
        %vm1084 = vmor %vm1082, %vm1083
        %v1085 = vsel %vm1084, %v1077, %v1081
        %v1086 = vand.u32 2147483647, %v1005
        %vm1087 = vcmp.eq.f32.partialorder %v1086, 8.507059e+37
        %v1088 = vand.u32 %v1005, 2147483648
        %v1089 = vor.u32 1.1754944e-38, %v1088
        %v1090 = vsel %vm1087, %v1089, %v1085
        %v1091 = vmul.f32 %v976, %v1090
        %v1092 = vrcp.pop %v1006
        %v1093 = vmul.f32 %v1006, %v1092
        %v1094 = vsub.f32 1.0, %v1093
        %v1095 = vmul.f32 %v1092, %v1094
        %v1096 = vadd.f32 %v1092, %v1095
        %vm1097 = vweird.f32 %v1006
        %vm1098 = vweird.f32 %v1092
        %vm1099 = vmor %vm1097, %vm1098
        %v1100 = vsel %vm1099, %v1092, %v1096
        %v1101 = vand.u32 2147483647, %v1006
        %vm1102 = vcmp.eq.f32.partialorder %v1101, 8.507059e+37
        %v1103 = vand.u32 %v1006, 2147483648
        %v1104 = vor.u32 1.1754944e-38, %v1103
        %v1105 = vsel %vm1102, %v1104, %v1100
        %v1106 = vmul.f32 %v983, %v1105
        %v1107 = vrcp.pop %v1007
        %v1108 = vmul.f32 %v1007, %v1107
        %v1109 = vsub.f32 1.0, %v1108
        %v1110 = vmul.f32 %v1107, %v1109
        %v1111 = vadd.f32 %v1107, %v1110
        %vm1112 = vweird.f32 %v1007
        %vm1113 = vweird.f32 %v1107
        %vm1114 = vmor %vm1112, %vm1113
        %v1115 = vsel %vm1114, %v1107, %v1111
        %v1116 = vand.u32 2147483647, %v1007
        %vm1117 = vcmp.eq.f32.partialorder %v1116, 8.507059e+37
        %v1118 = vand.u32 %v1007, 2147483648
        %v1119 = vor.u32 1.1754944e-38, %v1118
        %v1120 = vsel %vm1117, %v1119, %v1115
        %v1121 = vmul.f32 %v990, %v1120
        %v1122 = vrcp.pop %v1008
        %v1123 = vmul.f32 %v1008, %v1122
        %v1124 = vsub.f32 1.0, %v1123
        %v1125 = vmul.f32 %v1122, %v1124
        %v1126 = vadd.f32 %v1122, %v1125
        %vm1127 = vweird.f32 %v1008
        %vm1128 = vweird.f32 %v1122
        %vm1129 = vmor %vm1127, %vm1128
        %v1130 = vsel %vm1129, %v1122, %v1126
        %v1131 = vand.u32 2147483647, %v1008
        %vm1132 = vcmp.eq.f32.partialorder %v1131, 8.507059e+37
        %v1133 = vand.u32 %v1008, 2147483648
        %v1134 = vor.u32 1.1754944e-38, %v1133
        %v1135 = vsel %vm1132, %v1134, %v1130
        %v1136 = vmul.f32 %v997, %v1135
        %v1145 = vrot.slane %v1046, 7
        %vm1146 = vcmask 1041409
        %v1147 = vsel %vm1146, %v1145, %v1031
        %v1148 = vrot.slane %v1061, 6
        %vm1149 = vcmask 1042434
        %v1150 = vsel %vm1149, %v1148, %v1147
        %v1151 = vrot.slane %v1076, 5
        %vm1152 = vcmask 1043459
        %v1153 = vsel %vm1152, %v1151, %v1150
        %v1154 = vrot.slane %v1091, 4
        %vm1155 = vcmask 1044484
        %v1156 = vsel %vm1155, %v1154, %v1153
        %v1157 = vrot.slane %v1106, 3
        %vm1158 = vcmask 1045509
        %v1159 = vsel %vm1158, %v1157, %v1156
        %v1160 = vrot.slane %v1121, 2
        %vm1161 = vcmask 1046534
        %v1162 = vsel %vm1161, %v1160, %v1159
        %v1163 = vrot.slane %v1136, 1
        %vm1164 = vcmask 1047559
        %v1165 = vsel %vm1164, %v1163, %v1162
        %1170 = vrot.lane.b32.xlu0 %v356, 96
        %v1171 = vpop.permute.xlu0 %1170
        %1172 = vrot.lane.b32.xlu0 %v357, 96
        %v1173 = vpop.permute.xlu0 %1172
        %1174 = vrot.lane.b32.xlu0 %v358, 96
        %v1175 = vpop.permute.xlu0 %1174
        %1176 = vrot.lane.b32.xlu0 %v359, 96
        %v1177 = vpop.permute.xlu0 %1176
        %1182 = vrot.lane.b32.xlu0 %v436, 64
        %v1183 = vpop.permute.xlu0 %1182
        %v1185 = vsel %vm631, %v1165, 0
        %1187 = vmatpush.msra.mxu0 0.0
        %1188 = vmatpush.msra.mxu0 0.0
        %1189 = vmatpush.msra.mxu0 0.0
        %1190 = vmatpush.msra.mxu0 0.0
        %1191 = vmatpush.msra.mxu0 0.0
        %1192 = vmatpush.msra.mxu0 0.0
        %1193 = vmatpush.msra.mxu0 0.0
        %1194 = vmatpush.msra.mxu0 0.0
        %1195 = vmatpush.msra.mxu0 0.0
        %1196 = vmatpush.msra.mxu0 0.0
        %1197 = vmatpush.msra.mxu0 0.0
        %1198 = vmatpush.msra.mxu0 0.0
        %1199 = vmatpush.msra.mxu0 %v1177
        %1200 = vmatpush.msra.mxu0 %v1175
        %1201 = vmatpush.msra.mxu0 %v1173
        %1202 = vmatpush.msra.mxu0 %v1171
        %1203 = vmatmul.f32.gmra.mxu0 %v1185
        %v1204 = vpop.f32.mrf.mxu0
        %v1205 = vadd.f32 %v1183, %v1204
        %1206 = vdwg.mxu0
        %v1207 = vmax.f32 %v1205, 0.0
        %1208 = vrot.lane.b32.xlu0 %v356, 64
        %v1209 = vpop.permute.xlu0 %1208
        %1210 = vrot.lane.b32.xlu0 %v357, 64
        %v1211 = vpop.permute.xlu0 %1210
        %1212 = vrot.lane.b32.xlu0 %v358, 64
        %v1213 = vpop.permute.xlu0 %1212
        %1214 = vrot.lane.b32.xlu0 %v359, 64
        %v1215 = vpop.permute.xlu0 %1214
        %1220 = vrot.lane.b32.xlu0 %v436, 32
        %v1221 = vpop.permute.xlu0 %1220
        %v1224 = vsel %vm631, %v1207, 0
        %1226 = vmatpush.msra.mxu0 0.0
        %1227 = vmatpush.msra.mxu0 0.0
        %1228 = vmatpush.msra.mxu0 0.0
        %1229 = vmatpush.msra.mxu0 0.0
        %1230 = vmatpush.msra.mxu0 0.0
        %1231 = vmatpush.msra.mxu0 0.0
        %1232 = vmatpush.msra.mxu0 0.0
        %1233 = vmatpush.msra.mxu0 0.0
        %1234 = vmatpush.msra.mxu0 0.0
        %1235 = vmatpush.msra.mxu0 0.0
        %1236 = vmatpush.msra.mxu0 0.0
        %1237 = vmatpush.msra.mxu0 0.0
        %1238 = vmatpush.msra.mxu0 %v1215
        %1239 = vmatpush.msra.mxu0 %v1213
        %1240 = vmatpush.msra.mxu0 %v1211
        %1241 = vmatpush.msra.mxu0 %v1209
        %1242 = vmatmul.f32.gmra.mxu0 %v1224
        %v1243 = vpop.f32.mrf.mxu0
        %v1244 = vadd.f32 %v1221, %v1243
        %1245 = vdwg.mxu0
        %v1246 = vmax.f32 %v1244, 0.0
        %v1247 = vld [vmem:[%s5] sm:$0xff]
        %v1248 = vld [vmem:[%s5 + $0x8] sm:$0xff]
        %v1249 = vld [vmem:[%s5 + $0x10] sm:$0xff]
        %v1250 = vld [vmem:[%s5 + $0x18] sm:$0xff]
        %v1251 = vld [vmem:[%s7] sm:$0x1]
        %v1253 = vperm.slane %v1251, 0
        %v1256 = vsel %vm631, %v1246, 0
        %1258 = vmatpush.msra.mxu0 0.0
        %1259 = vmatpush.msra.mxu0 0.0
        %1260 = vmatpush.msra.mxu0 0.0
        %1261 = vmatpush.msra.mxu0 0.0
        %1262 = vmatpush.msra.mxu0 0.0
        %1263 = vmatpush.msra.mxu0 0.0
        %1264 = vmatpush.msra.mxu0 0.0
        %1265 = vmatpush.msra.mxu0 0.0
        %1266 = vmatpush.msra.mxu0 0.0
        %1267 = vmatpush.msra.mxu0 0.0
        %1268 = vmatpush.msra.mxu0 0.0
        %1269 = vmatpush.msra.mxu0 0.0
        %1270 = vmatpush.msra.mxu0 %v1250
        %1271 = vmatpush.msra.mxu0 %v1249
        %1272 = vmatpush.msra.mxu0 %v1248
        %1273 = vmatpush.msra.mxu0 %v1247
        %1274 = vmatmul.f32.gmra.mxu0 %v1256
        %v1275 = vpop.f32.mrf.mxu0
        %v1276 = vadd.f32 %v1253, %v1275
        %1277 = vdwg.mxu0
        %1278 = vst [vmem:[%s328] sm:$0xff] %v1276
        %s1279 = sand.u32 %s213, 1
        %s1280 = scalar_lea.sflag [#allocation3], %s1279
        %s1281 = sand.u32 %s213, 1
        %s1282 = smul.addr %s1281, 8
        %s1283 = scalar_lea.vmem [#allocation2], %s1282
        // Predicated region
        $region53: #{tpu_custom_call.1} parent=51 // pred_check
          %p1284 = pneg %p223
        $region54: #{tpu_custom_call.1} parent=51 // pred_check_branch
          %1286 = sbr.rel (%p1284) target = $region56
        $region55: #{tpu_custom_call.1} parent=51 // pred_region
          %1288 = vsyncadd %s1280, 0
          %s1289 = smul.addr %s22, 8
          %s1290 = scalar_lea.hbm %s8, %s1289
          %s1292 = sshll.u32 %s1283, 4
          %s1293 = int_to_ptr.vmem [resolvable:$true] %s1292
          %s1294 = sshll.u32 %s1290, 4
          %s1295 = int_to_ptr.hbm [resolvable:$true] %s1294
          %1297 = dma.vmem_to_hbm [thread:$0]  %s1293, 128, %s1295, %s1280
        $region56: #{tpu_custom_call.1} parent=51 // pred_fallthru
          _
      $region52: #{tpu_custom_call.1} parent=5 // pred_fallthru
        _
      %p1298 = scmp.le.s32.totalorder 2, %s17
      // Predicated region
      $region57: #{tpu_custom_call.1} parent=5 // pred_check
        %p1299 = pneg %p1298
      $region58: #{tpu_custom_call.1} parent=5 // pred_check_branch
        %1301 = sbr.rel (%p1299) target = $region60
      $region59: #{tpu_custom_call.1} parent=5 // pred_region
        %s1302 = ssub.s32 %s17, 2
        // Predicated region
        $region61: #{tpu_custom_call.1} parent=59 // pred_check
          %p1303 = pneg %p229
        $region62: #{tpu_custom_call.1} parent=59 // pred_check_branch
          %1305 = sbr.rel (%p1303) target = $region64
        $region63: #{tpu_custom_call.1} parent=59 // pred_region
          %s1306 = sand.u32 %s214, 1
          %s1307 = scalar_lea.sflag [#allocation3], %s1306
          %s1308 = sand.u32 %s214, 1
          %s1309 = smul.addr %s1308, 8
          %s1310 = scalar_lea.vmem [#allocation2], %s1309
          %1312 = dma.done %s1307, 128
        $region64: #{tpu_custom_call.1} parent=59 // pred_fallthru
          _
      $region60: #{tpu_custom_call.1} parent=5 // pred_fallthru
        _
    $region6: #{tpu_custom_call.1} parent=1 // loop_footer
      %s21 = sadd.s32 1, %s17
    $region7: #{tpu_custom_call.1} parent=1 // loop_footer_branch
      %16 = sbr.rel target = $region3
    $region8: #{tpu_custom_call.1} parent=1 // loop_exit
      _
    %1313 = vsyncpa [#allocation3], 1
    %s1314 = scalar_lea.sflag [#allocation3], 1
    %1315 = vsyncpa %s1314, 1

</llo_original>
